<compile_context>
chip_gen: v5e
topology: v5e:2x2
jax: 0.10.0
libtpu: 0.0.40
codegen_flags: <defaults>
</compile_context>

<pallas_src>
import functools

import numpy as np
import jax
import jax.numpy as jnp
from jax import lax
from jax.experimental import pallas as pl
from jax.experimental.pallas import tpu as pltpu


def _round_up(x, m):
    return ((x + m - 1) // m) * m


# ---------------------------------------------------------------------------
# Pallas kernel: one-hot gather matmul -> per-tap conv matmuls (roll im2col)
#                -> iota mask + max-pool -> fused heads -> lane-dense store
# ---------------------------------------------------------------------------
def cnn_kernel(ids_ref,     # VMEM (R, 1) int32 token ids for this batch tile
               table_ref,   # VMEM (Vpad, Epad) bf16 embedding table
               wconv_ref,   # VMEM (kmax, Epad, CPAD) bf16 fused per-tap conv weights
               whead_ref,   # VMEM (CPAD, OPAD) bf16 fused heads + fc_in identity
               bias_ref,    # VMEM (1, OPAD) f32 folded conv+fc biases
               out_ref,     # VMEM (Bt, OPAD) f32 lane-dense output slab
               *, seq_len, filters, num_filters):
    R = ids_ref.shape[0]                      # rows in this tile (= Bt * seq_len)
    Vp = table_ref.shape[0]
    cpad = wconv_ref.shape[2]
    Bt = R // seq_len
    kmax = max(filters)

    # --- nn.Embedding as a one-hot x table MXU matmul (table lives in VMEM) ---
    ids = ids_ref[...]                                               # (R, 1) i32
    hot = jnp.where(ids == lax.broadcasted_iota(jnp.int32, (R, Vp), 1),
                    1.0, 0.0).astype(jnp.bfloat16)                   # (R, Vp)
    emb = jnp.dot(hot, table_ref[...],
                  preferred_element_type=jnp.float32)                # (R, Epad) f32

    # --- all Conv1d taps as kmax accumulated matmuls; shift via XLU roll ------
    # roll(emb, R - j) puts row s+j at row s; the wrapped rows (s >= S-j) only
    # land in positions the -1e30 mask below removes (tap j feeds filters k>j).
    conv = jnp.dot(emb.astype(jnp.bfloat16), wconv_ref[0],
                   preferred_element_type=jnp.float32)               # (R, CPAD) f32
    for j in range(1, kmax):
        shifted = pltpu.roll(emb, shift=R - j, axis=0)
        conv = conv + jnp.dot(shifted.astype(jnp.bfloat16), wconv_ref[j],
                              preferred_element_type=jnp.float32)

    # --- kill invalid output positions (in-kernel iota mask, f32) -------------
    conv3 = conv.reshape(Bt, seq_len, cpad)
    pos = lax.broadcasted_iota(jnp.int32, conv3.shape, 1)            # s index
    col = lax.broadcasted_iota(jnp.int32, conv3.shape, 2)            # filter col
    vlen = jnp.full(conv3.shape, seq_len, jnp.int32)
    for f, k in enumerate(filters):
        in_f = (col >= f * num_filters) & (col < (f + 1) * num_filters)
        vlen = jnp.where(in_f, seq_len - k + 1, vlen)
    conv3 = jnp.where(pos < vlen, conv3, -1e30)

    pooled = jnp.max(conv3, axis=1)                                  # (Bt, CPAD) f32

    # --- fused task heads + fc_in passthrough; conv/fc biases folded in bias --
    out_ref[...] = jnp.dot(pooled.astype(jnp.bfloat16), whead_ref[...],
                           preferred_element_type=jnp.float32) + bias_ref[...]


# ---------------------------------------------------------------------------
# Wrapper: weight fusion / padding / bf16 cast (once) + batch-tiled pallas_call
# ---------------------------------------------------------------------------
def cnn_forward(input_ids, embed_table, conv_params, fc_params, *, batch_tile=8):
    B, S = input_ids.shape
    V, E = embed_table.shape
    filters = tuple(w.shape[2] for w, _ in conv_params)
    nf = conv_params[0][0].shape[0]
    kmax = max(filters)
    cout = nf * len(filters)
    n_logits = [w.shape[0] for w, _ in fc_params]

    Vp = _round_up(V, 128)
    Ep = _round_up(E, 128)
    CPAD = _round_up(cout, 128)
    OPAD = _round_up(sum(n_logits) + cout, 128)
    assert batch_tile % 8 == 0 and B % batch_tile == 0, "tile must be 8-aligned"

    # Padded bf16 table (padded rows never selected; padded cols contribute 0).
    table = jnp.zeros((Vp, Ep), jnp.float32).at[:V, :E].set(embed_table)
    table_bf = table.astype(jnp.bfloat16)

    # Per-tap fused conv weight (Ep, CPAD); taps j >= k of shorter filters are 0.
    taps = []
    for j in range(kmax):
        cols = [w[:, :, j].T if j < k else jnp.zeros((E, nf), jnp.float32)
                for (w, _), k in zip(conv_params, filters)]
        tap = jnp.concatenate(cols, axis=1)                            # (E, cout)
        taps.append(jnp.zeros((Ep, CPAD), jnp.float32).at[:E, :cout].set(tap))
    wconv = jnp.stack(taps, axis=0).astype(jnp.bfloat16)               # (kmax,Ep,CPAD)
    bconv = jnp.concatenate([b.reshape(1, nf) for _, b in conv_params], axis=1)
    bconv = jnp.zeros((1, CPAD), jnp.float32).at[:, :cout].set(bconv)

    # Fused heads: [fcw0^T | fcw1^T | ... | I (fc_in passthrough)] padded 128x128.
    whead = jnp.concatenate([w.T for w, _ in fc_params]
                            + [jnp.eye(cout, dtype=jnp.float32)], axis=1)
    whead_f32 = jnp.zeros((CPAD, OPAD), jnp.float32).at[:cout, :whead.shape[1]].set(whead)
    bhead = jnp.concatenate([b.reshape(1, -1) for _, b in fc_params], axis=1)
    bhead = jnp.zeros((1, OPAD), jnp.float32).at[:, :bhead.shape[1]].set(bhead)
    # Conv bias folded through the head: max(x) + b == max(x + b) per filter col.
    bfull = bconv @ whead_f32 + bhead                                   # (1, OPAD) f32
    whead_bf = whead_f32.astype(jnp.bfloat16)

    ids = input_ids.reshape(B * S, 1).astype(jnp.int32)

    R = batch_tile * S
    grid = (B // batch_tile,)
    kernel = functools.partial(cnn_kernel, seq_len=S, filters=filters,
                               num_filters=nf)

    flops = 2 * B * S * (Vp * Ep + kmax * Ep * CPAD) + 2 * B * CPAD * OPAD
    bytes_accessed = (4 * B * S + 2 * Vp * Ep + 2 * kmax * Ep * CPAD
                      + 2 * CPAD * OPAD + 4 * OPAD + 4 * B * OPAD)

    out = pl.pallas_call(
        kernel,
        out_shape=jax.ShapeDtypeStruct((B, OPAD), jnp.float32),
        grid=grid,
        in_specs=[
            pl.BlockSpec((R, 1), lambda b: (b, 0)),                    # token ids
            pl.BlockSpec((Vp, Ep), lambda b: (0, 0)),                  # bf16 table
            pl.BlockSpec((kmax, Ep, CPAD), lambda b: (0, 0, 0)),       # conv taps
            pl.BlockSpec((CPAD, OPAD), lambda b: (0, 0)),              # fused heads
            pl.BlockSpec((1, OPAD), lambda b: (0, 0)),                 # folded bias
        ],
        out_specs=pl.BlockSpec((batch_tile, OPAD), lambda b: (b, 0)),
        compiler_params=pltpu.CompilerParams(
            dimension_semantics=("parallel",),
            vmem_limit_bytes=64 * 1024 * 1024),
        cost_estimate=pl.CostEstimate(flops=flops, transcendentals=0,
                                      bytes_accessed=bytes_accessed),
    )(ids, table_bf, wconv, whead_bf, bfull)

    # Slice the lane-dense slab apart: [logits_task0 | logits_task1 | fc_in | pad]
    logits, col = [], 0
    for nl in n_logits:
        logits.append(out[:, col:col + nl])
        col += nl
    fc_in = out[:, col:col + cout]

    loss = jnp.zeros((), jnp.float32)   # labels=None path of the PyTorch forward
    # TODO(synk): optional per-task CrossEntropyLoss when labels are given and
    # use_prior_tasks intertask projections (tiny (B, n_labels) ops, kept outside).
    return loss, logits, fc_in


# ---------------------------------------------------------------------------
# Pure-JAX reference for correctness checking
# ---------------------------------------------------------------------------
def reference_forward(input_ids, embed_table, conv_params, fc_params):
    emb = embed_table[input_ids]                                       # (B, S, E)
    B, S, E = emb.shape
    pooled = []
    for w, b in conv_params:
        F_, _, k = w.shape
        L = S - k + 1
        cols = []
        for t in range(L):
            seg = emb[:, t:t + k, :]                                   # (B, k, E)
            cols.append(jnp.einsum('bke,fek->bf', seg, w) + b.reshape(1, F_))
        conv = jnp.stack(cols, axis=1)                                 # (B, L, F)
        pooled.append(conv.max(axis=1))
    fc_in = jnp.concatenate(pooled, axis=1)
    logits = [fc_in @ w.T + b.reshape(1, -1) for w, b in fc_params]
    return logits, fc_in


if __name__ == "__main__":
    # Module-default hidden sizes (embed_dims=100, num_filters=25, filters=(1,2,3)),
    # small batch/seq; 2 tasks with 3 and 4 labels.
    vocab_size, embed_dims, num_filters = 100, 100, 25
    filters = (1, 2, 3)
    num_labels = (3, 4)
    B, S = 16, 16

    key = jax.random.PRNGKey(0)
    keys = jax.random.split(key, 16)

    def bf16_round(x):   # kernel runs MXU operands in bf16; pre-round params so the
        return x.astype(jnp.bfloat16).astype(jnp.float32)  # f32 reference matches

    input_ids = jax.random.randint(keys[0], (B, S), 0, vocab_size, dtype=jnp.int32)
    embed_table = bf16_round(
        jax.random.normal(keys[1], (vocab_size, embed_dims), jnp.float32))

    conv_params = []
    for i, k in enumerate(filters):
        w = bf16_round(0.1 * jax.random.normal(keys[2 + 2 * i],
                                               (num_filters, embed_dims, k),
                                               jnp.float32))
        b = bf16_round(0.1 * jax.random.normal(keys[3 + 2 * i], (1, num_filters),
                                               jnp.float32))
        conv_params.append((w, b))

    feat = num_filters * len(filters)
    fc_params = []
    for i, nl in enumerate(num_labels):
        w = bf16_round(0.1 * jax.random.normal(keys[10 + 2 * i], (nl, feat),
                                               jnp.float32))
        b = bf16_round(0.1 * jax.random.normal(keys[11 + 2 * i], (1, nl),
                                               jnp.float32))
        fc_params.append((w, b))

    loss, logits, fc_in = cnn_forward(input_ids, embed_table, conv_params,
                                      fc_params, batch_tile=8)
    jax.block_until_ready(fc_in)
    for lg in logits:
        jax.block_until_ready(lg)

    ref_logits, ref_fc_in = reference_forward(input_ids, embed_table,
                                              conv_params, fc_params)
    # bf16 MXU operands (pooled is rounded to bf16 before the head matmul), so
    # compare with a bf16-appropriate tolerance.
    assert np.allclose(np.asarray(fc_in), np.asarray(ref_fc_in),
                       rtol=5e-2, atol=5e-2), "fc_in mismatch"
    for lg, rlg in zip(logits, ref_logits):
        assert np.allclose(np.asarray(lg), np.asarray(rlg),
                           rtol=5e-2, atol=5e-2), "logits mismatch"
    assert float(loss) == 0.0

    print("KERNEL_OK")
</pallas_src>

<mosaic_0001>
module attributes {stable_mosaic.version = 11 : i64} {
  func.func @cnn_kernel(%arg0: i32, %arg1: memref<128x1xi32, #tpu.memory_space<vmem>>, %arg2: memref<128x128xbf16, #tpu.memory_space<vmem>>, %arg3: memref<3x128x128xbf16, #tpu.memory_space<vmem>>, %arg4: memref<128x128xbf16, #tpu.memory_space<vmem>>, %arg5: memref<1x128xf32, #tpu.memory_space<vmem>>, %arg6: memref<8x128xf32, #tpu.memory_space<vmem>>) attributes {dimension_semantics = [#tpu.dimension_semantics<parallel>], iteration_bounds = array<i64: 2>, scalar_prefetch = 0 : i64, scratch_operands = 0 : i64, tpu.core_type = #tpu.core_type<tc>, window_params = [{transform_indices = @transform_0, window_bounds = array<i64: 128, 1>}, {pipeline_mode = #tpu.pipeline_mode<synchronous>, transform_indices = @transform_1, window_bounds = array<i64: 128, 128>}, {pipeline_mode = #tpu.pipeline_mode<synchronous>, transform_indices = @transform_2, window_bounds = array<i64: 3, 128, 128>}, {pipeline_mode = #tpu.pipeline_mode<synchronous>, transform_indices = @transform_3, window_bounds = array<i64: 128, 128>}, {pipeline_mode = #tpu.pipeline_mode<synchronous>, transform_indices = @transform_4, window_bounds = array<i64: 1, 128>}, {transform_indices = @transform_5, window_bounds = array<i64: 8, 128>}]} {
    %c0 = arith.constant 0 : index
    %c0_0 = arith.constant 0 : index
    %0 = vector.load %arg1[%c0, %c0_0] : memref<128x1xi32, #tpu.memory_space<vmem>>, vector<128x1xi32>
    %1 = tpu.iota {dimensions = array<i32: 1>} : vector<128x128xi32>
    %2 = vector.broadcast %0 : vector<128x1xi32> to vector<128x128xi32>
    %3 = arith.cmpi eq, %2, %1 : vector<128x128xi32>
    %cst = arith.constant 1.000000e+00 : f32
    %cst_1 = arith.constant 0.000000e+00 : f32
    %4 = vector.broadcast %cst : f32 to vector<128x128xf32>
    %5 = vector.broadcast %cst_1 : f32 to vector<128x128xf32>
    %6 = arith.select %3, %4, %5 : vector<128x128xi1>, vector<128x128xf32>
    %7 = arith.truncf %6 : vector<128x128xf32> to vector<128x128xbf16>
    %c0_2 = arith.constant 0 : index
    %c0_3 = arith.constant 0 : index
    %8 = vector.load %arg2[%c0_2, %c0_3] : memref<128x128xbf16, #tpu.memory_space<vmem>>, vector<128x128xbf16>
    %cst_4 = arith.constant dense<0.000000e+00> : vector<128x128xf32>
    %9 = tpu.matmul %7, %8, %cst_4 {dimension_numbers = #tpu.dot_dimension_numbers<[1], [0], [0], [1], [0, 0, 1, 1], [], []>} : vector<128x128xbf16>, vector<128x128xbf16>, vector<128x128xf32> -> vector<128x128xf32>
    %10 = arith.truncf %9 : vector<128x128xf32> to vector<128x128xbf16>
    %c0_5 = arith.constant 0 : index
    %c0_6 = arith.constant 0 : index
    %c0_7 = arith.constant 0 : index
    %11 = vector.load %arg3[%c0_5, %c0_6, %c0_7] : memref<3x128x128xbf16, #tpu.memory_space<vmem>>, vector<1x128x128xbf16>
    %12 = vector.shape_cast %11 : vector<1x128x128xbf16> to vector<128x128xbf16>
    %cst_8 = arith.constant dense<0.000000e+00> : vector<128x128xf32>
    %13 = tpu.matmul %10, %12, %cst_8 {dimension_numbers = #tpu.dot_dimension_numbers<[1], [0], [0], [1], [0, 0, 1, 1], [], []>} : vector<128x128xbf16>, vector<128x128xbf16>, vector<128x128xf32> -> vector<128x128xf32>
    %c127_i32 = arith.constant 127 : i32
    %14 = tpu.dynamic_rotate %9 by %c127_i32 dim 0 : vector<128x128xf32>, i32 -> vector<128x128xf32>
    %15 = arith.truncf %14 : vector<128x128xf32> to vector<128x128xbf16>
    %c1 = arith.constant 1 : index
    %c0_9 = arith.constant 0 : index
    %c0_10 = arith.constant 0 : index
    %16 = vector.load %arg3[%c1, %c0_9, %c0_10] : memref<3x128x128xbf16, #tpu.memory_space<vmem>>, vector<1x128x128xbf16>
    %17 = vector.shape_cast %16 : vector<1x128x128xbf16> to vector<128x128xbf16>
    %cst_11 = arith.constant dense<0.000000e+00> : vector<128x128xf32>
    %18 = tpu.matmul %15, %17, %cst_11 {dimension_numbers = #tpu.dot_dimension_numbers<[1], [0], [0], [1], [0, 0, 1, 1], [], []>} : vector<128x128xbf16>, vector<128x128xbf16>, vector<128x128xf32> -> vector<128x128xf32>
    %19 = arith.addf %13, %18 : vector<128x128xf32>
    %c126_i32 = arith.constant 126 : i32
    %20 = tpu.dynamic_rotate %9 by %c126_i32 dim 0 : vector<128x128xf32>, i32 -> vector<128x128xf32>
    %21 = arith.truncf %20 : vector<128x128xf32> to vector<128x128xbf16>
    %c2 = arith.constant 2 : index
    %c0_12 = arith.constant 0 : index
    %c0_13 = arith.constant 0 : index
    %22 = vector.load %arg3[%c2, %c0_12, %c0_13] : memref<3x128x128xbf16, #tpu.memory_space<vmem>>, vector<1x128x128xbf16>
    %23 = vector.shape_cast %22 : vector<1x128x128xbf16> to vector<128x128xbf16>
    %cst_14 = arith.constant dense<0.000000e+00> : vector<128x128xf32>
    %24 = tpu.matmul %21, %23, %cst_14 {dimension_numbers = #tpu.dot_dimension_numbers<[1], [0], [0], [1], [0, 0, 1, 1], [], []>} : vector<128x128xbf16>, vector<128x128xbf16>, vector<128x128xf32> -> vector<128x128xf32>
    %25 = arith.addf %19, %24 : vector<128x128xf32>
    %26 = vector.shape_cast %25 : vector<128x128xf32> to vector<8x16x128xf32>
    %27 = tpu.iota {dimensions = array<i32: 1>} : vector<8x16x128xi32>
    %28 = tpu.iota {dimensions = array<i32: 2>} : vector<8x16x128xi32>
    %c16_i32 = arith.constant 16 : i32
    %29 = vector.broadcast %c16_i32 : i32 to vector<8x16x128xi32>
    %c0_i32 = arith.constant 0 : i32
    %30 = vector.broadcast %c0_i32 : i32 to vector<8x16x128xi32>
    %31 = arith.cmpi sge, %28, %30 : vector<8x16x128xi32>
    %c25_i32 = arith.constant 25 : i32
    %32 = vector.broadcast %c25_i32 : i32 to vector<8x16x128xi32>
    %33 = arith.cmpi slt, %28, %32 : vector<8x16x128xi32>
    %34 = arith.andi %31, %33 : vector<8x16x128xi1>
    %c16_i32_15 = arith.constant 16 : i32
    %35 = vector.broadcast %c16_i32_15 : i32 to vector<8x16x128xi32>
    %36 = arith.select %34, %35, %29 : vector<8x16x128xi1>, vector<8x16x128xi32>
    %c25_i32_16 = arith.constant 25 : i32
    %37 = vector.broadcast %c25_i32_16 : i32 to vector<8x16x128xi32>
    %38 = arith.cmpi sge, %28, %37 : vector<8x16x128xi32>
    %c50_i32 = arith.constant 50 : i32
    %39 = vector.broadcast %c50_i32 : i32 to vector<8x16x128xi32>
    %40 = arith.cmpi slt, %28, %39 : vector<8x16x128xi32>
    %41 = arith.andi %38, %40 : vector<8x16x128xi1>
    %c15_i32 = arith.constant 15 : i32
    %42 = vector.broadcast %c15_i32 : i32 to vector<8x16x128xi32>
    %43 = arith.select %41, %42, %36 : vector<8x16x128xi1>, vector<8x16x128xi32>
    %c50_i32_17 = arith.constant 50 : i32
    %44 = vector.broadcast %c50_i32_17 : i32 to vector<8x16x128xi32>
    %45 = arith.cmpi sge, %28, %44 : vector<8x16x128xi32>
    %c75_i32 = arith.constant 75 : i32
    %46 = vector.broadcast %c75_i32 : i32 to vector<8x16x128xi32>
    %47 = arith.cmpi slt, %28, %46 : vector<8x16x128xi32>
    %48 = arith.andi %45, %47 : vector<8x16x128xi1>
    %c14_i32 = arith.constant 14 : i32
    %49 = vector.broadcast %c14_i32 : i32 to vector<8x16x128xi32>
    %50 = arith.select %48, %49, %43 : vector<8x16x128xi1>, vector<8x16x128xi32>
    %51 = arith.cmpi slt, %27, %50 : vector<8x16x128xi32>
    %cst_18 = arith.constant -1.000000e+30 : f32
    %52 = vector.broadcast %cst_18 : f32 to vector<8x16x128xf32>
    %53 = arith.select %51, %26, %52 : vector<8x16x128xi1>, vector<8x16x128xf32>
    %cst_19 = arith.constant dense<0xFF800000> : vector<8x128xf32>
    %54 = vector.multi_reduction <maximumf>, %53, %cst_19 [1] : vector<8x16x128xf32> to vector<8x128xf32>
    %55 = arith.truncf %54 : vector<8x128xf32> to vector<8x128xbf16>
    %c0_20 = arith.constant 0 : index
    %c0_21 = arith.constant 0 : index
    %56 = vector.load %arg4[%c0_20, %c0_21] : memref<128x128xbf16, #tpu.memory_space<vmem>>, vector<128x128xbf16>
    %cst_22 = arith.constant dense<0.000000e+00> : vector<8x128xf32>
    %57 = tpu.matmul %55, %56, %cst_22 {dimension_numbers = #tpu.dot_dimension_numbers<[1], [0], [0], [1], [0, 0, 1, 1], [], []>} : vector<8x128xbf16>, vector<128x128xbf16>, vector<8x128xf32> -> vector<8x128xf32>
    %c0_23 = arith.constant 0 : index
    %c0_24 = arith.constant 0 : index
    %58 = vector.load %arg5[%c0_23, %c0_24] : memref<1x128xf32, #tpu.memory_space<vmem>>, vector<1x128xf32>
    %59 = vector.broadcast %58 : vector<1x128xf32> to vector<8x128xf32>
    %60 = arith.addf %57, %59 : vector<8x128xf32>
    %c0_25 = arith.constant 0 : index
    %c0_26 = arith.constant 0 : index
    %61 = vector.load %arg6[%c0_25, %c0_26] : memref<8x128xf32, #tpu.memory_space<vmem>>, vector<8x128xf32>
    tpu.vector_store %arg6[%c0_25, %c0_26], %60 {strides = array<i32>} : memref<8x128xf32, #tpu.memory_space<vmem>>, vector<8x128xf32>,
    return
  }
  func.func @transform_0(%arg0: i32) -> (i32, i32) {
    %c0_i32 = arith.constant 0 : i32
    %c0_i32_0 = arith.constant 0 : i32
    return %arg0, %c0_i32 : i32, i32
  }
  func.func @transform_1(%arg0: i32) -> (i32, i32) {
    %c0_i32 = arith.constant 0 : i32
    %c0_i32_0 = arith.constant 0 : i32
    %c0_i32_1 = arith.constant 0 : i32
    return %c0_i32, %c0_i32_0 : i32, i32
  }
  func.func @transform_2(%arg0: i32) -> (i32, i32, i32) {
    %c0_i32 = arith.constant 0 : i32
    %c0_i32_0 = arith.constant 0 : i32
    %c0_i32_1 = arith.constant 0 : i32
    %c0_i32_2 = arith.constant 0 : i32
    return %c0_i32, %c0_i32_0, %c0_i32_1 : i32, i32, i32
  }
  func.func @transform_3(%arg0: i32) -> (i32, i32) {
    %c0_i32 = arith.constant 0 : i32
    %c0_i32_0 = arith.constant 0 : i32
    %c0_i32_1 = arith.constant 0 : i32
    return %c0_i32, %c0_i32_0 : i32, i32
  }
  func.func @transform_4(%arg0: i32) -> (i32, i32) {
    %c0_i32 = arith.constant 0 : i32
    %c0_i32_0 = arith.constant 0 : i32
    %c0_i32_1 = arith.constant 0 : i32
    return %c0_i32, %c0_i32_0 : i32, i32
  }
  func.func @transform_5(%arg0: i32) -> (i32, i32) {
    %c0_i32 = arith.constant 0 : i32
    %c0_i32_0 = arith.constant 0 : i32
    return %arg0, %c0_i32 : i32, i32
  }
}

</mosaic_0001>

<llo_original>
// kernel: tpu_custom_call.1
$region0: #{tpu_custom_call.1}
  #allocation0 [shape = 'u32[]', space=smem, size = 0x4, offset = 0x4, fixed_abs, tag = 'smem constant byte address 0x4 - core index']
  #allocation1 [shape = 'u32[72,128]{1,0:T(1,128)}', space=vmem, size = 0x9000, scoped, tag = 'internal scratch']
  %s0 = inlined_call_operand.vmem [shape: s32[256,1], index: 0, kind: input, shape index: {}]
  %s1 = inlined_call_operand.vmem [shape: bf16[128,128], index: 1, kind: input, shape index: {}]
  %s2 = inlined_call_operand.vmem [shape: bf16[3,128,128], index: 2, kind: input, shape index: {}]
  %s3 = inlined_call_operand.hbm [shape: bf16[128,128], index: 3, kind: input, shape index: {}]
  %s4 = inlined_call_operand.vmem [shape: f32[1,128], index: 4, kind: input, shape index: {}]
  %s5 = inlined_call_operand.hbm [shape: f32[16,128], index: 5, kind: output, shape index: {}]
  %s6 = sld [smem:[#allocation0]]
  $region57: #{tpu_custom_call.1} parent=0
    _
  %s8 = ssub.s32 1, %s6
  %s9 = scalar_select 0, %s8, %s6
  $region1: #{tpu_custom_call.1} parent=0
    #allocation2 [shape = 'u8[32768]{0}', space=vmem, size = 0x8000, scoped, tag = 'input window, operand 3, single buffered']
    #allocation3 [shape = 's32[2]{0}', space=sflag, size = 0x8, scoped, tag = 'scoped memory for tpu_custom_call.1']
    #allocation4 [shape = 's32[2]{0}', space=sflag, size = 0x8, scoped, tag = 'scoped memory for tpu_custom_call.1']
    #allocation5 [shape = 'u8[8192]{0}', space=vmem, size = 0x2000, scoped, tag = 'output window, operand 0']
    %10 = vsyncpa [#allocation3], 0
    %11 = vsyncpa [#allocation4], 0
    %s12 = scalar_lea.sflag [#allocation4], 1
    %13 = vsyncpa %s12, 0
    loop: start=0, step=1, limit=4
    $region2: #{tpu_custom_call.1} parent=1 // loop_pre_header
      _
    $region3: #{tpu_custom_call.1} parent=1 // loop_header
      %s15 = sphi 0, %s19
      %p16 = scmp.ge.s32.totalorder %s15, 4
      %s25 = sphi 0, %s27
      %s28 = sphi 0, %s25
      %s29 = sphi 0, %s28
      %s45 = sphi 0, %s29
      %s49 = sphi 0, %s49
      %s51 = sphi 0, %s49
      %s52 = sphi 0, %s51
      %s66 = sphi 0, %s52
      %s70 = sphi 0, %s70
      %s72 = sphi 0, %s70
      %s73 = sphi 0, %s72
      %s87 = sphi 0, %s73
      %s91 = sphi 0, %s91
      %s93 = sphi 0, %s91
      %s94 = sphi 0, %s93
      %s108 = sphi 0, %s94
      %s112 = sphi 0, %s112
      %s114 = sphi 0, %s112
      %s115 = sphi 0, %s114
      %s129 = sphi 0, %s115
      %s135 = sphi 0, %s137
      %s138 = sphi 0, %s135
      %s139 = sphi 0, %s138
      %s155 = sphi 0, %s139
    $region4: #{tpu_custom_call.1} parent=1 // loop_header_branch
      %18 = sbr.rel (%p16) target = $region8
    $region5: #{tpu_custom_call.1} parent=1 // loop_body
      %s20 = ssub.s32 %s15, 1
      %s21 = ssub.s32 %s15, 2
      %s22 = sadd.s32 %s15, 1
      %s23 = ssub.s32 %s15, %s22
      %p24 = scmp.eq.s32.totalorder %s23, 0
      %s26 = sadd.s32 %s25, 1
      %s27 = scalar_select %p24, %s25, %s26
      %p30 = pneg %p24
      %p31 = scmp.eq.s32.totalorder %s15, 1
      %p32 = por %p30, %p31
      %p33 = scmp.ne.s32.totalorder %s25, %s28
      %p34 = scmp.eq.s32.totalorder %s15, 0
      %p35 = por %p33, %p34
      %p36 = scmp.ne.s32.totalorder %s25, %s28
      %p37 = scmp.eq.s32.totalorder %s20, 1
      %p38 = por %p36, %p37
      %p39 = scmp.ne.s32.totalorder %s28, %s29
      %p40 = scmp.eq.s32.totalorder %s20, 0
      %p41 = por %p39, %p40
      %p42 = scmp.ne.s32.totalorder %s28, %s29
      %p43 = scmp.eq.s32.totalorder %s21, 1
      %p44 = por %p42, %p43
      %p46 = scmp.ne.s32.totalorder %s29, %s45
      %p47 = scmp.eq.s32.totalorder %s21, 0
      %p48 = por %p46, %p47
      %s50 = sadd.s32 %s49, 1
      %p53 = scmp.eq.s32.totalorder %s15, 1
      %p54 = scmp.ne.s32.totalorder %s49, %s51
      %p55 = scmp.eq.s32.totalorder %s15, 0
      %p56 = por %p54, %p55
      %p57 = scmp.ne.s32.totalorder %s49, %s51
      %p58 = scmp.eq.s32.totalorder %s20, 1
      %p59 = por %p57, %p58
      %p60 = scmp.ne.s32.totalorder %s51, %s52
      %p61 = scmp.eq.s32.totalorder %s20, 0
      %p62 = por %p60, %p61
      %p63 = scmp.ne.s32.totalorder %s51, %s52
      %p64 = scmp.eq.s32.totalorder %s21, 1
      %p65 = por %p63, %p64
      %p67 = scmp.ne.s32.totalorder %s52, %s66
      %p68 = scmp.eq.s32.totalorder %s21, 0
      %p69 = por %p67, %p68
      %s71 = sadd.s32 %s70, 1
      %p74 = scmp.eq.s32.totalorder %s15, 1
      %p75 = scmp.ne.s32.totalorder %s70, %s72
      %p76 = scmp.eq.s32.totalorder %s15, 0
      %p77 = por %p75, %p76
      %p78 = scmp.ne.s32.totalorder %s70, %s72
      %p79 = scmp.eq.s32.totalorder %s20, 1
      %p80 = por %p78, %p79
      %p81 = scmp.ne.s32.totalorder %s72, %s73
      %p82 = scmp.eq.s32.totalorder %s20, 0
      %p83 = por %p81, %p82
      %p84 = scmp.ne.s32.totalorder %s72, %s73
      %p85 = scmp.eq.s32.totalorder %s21, 1
      %p86 = por %p84, %p85
      %p88 = scmp.ne.s32.totalorder %s73, %s87
      %p89 = scmp.eq.s32.totalorder %s21, 0
      %p90 = por %p88, %p89
      %s92 = sadd.s32 %s91, 1
      %p95 = scmp.eq.s32.totalorder %s15, 1
      %p96 = scmp.ne.s32.totalorder %s91, %s93
      %p97 = scmp.eq.s32.totalorder %s15, 0
      %p98 = por %p96, %p97
      %p99 = scmp.ne.s32.totalorder %s91, %s93
      %p100 = scmp.eq.s32.totalorder %s20, 1
      %p101 = por %p99, %p100
      %p102 = scmp.ne.s32.totalorder %s93, %s94
      %p103 = scmp.eq.s32.totalorder %s20, 0
      %p104 = por %p102, %p103
      %p105 = scmp.ne.s32.totalorder %s93, %s94
      %p106 = scmp.eq.s32.totalorder %s21, 1
      %p107 = por %p105, %p106
      %p109 = scmp.ne.s32.totalorder %s94, %s108
      %p110 = scmp.eq.s32.totalorder %s21, 0
      %p111 = por %p109, %p110
      %s113 = sadd.s32 %s112, 1
      %p116 = scmp.eq.s32.totalorder %s15, 1
      %p117 = scmp.ne.s32.totalorder %s112, %s114
      %p118 = scmp.eq.s32.totalorder %s15, 0
      %p119 = por %p117, %p118
      %p120 = scmp.ne.s32.totalorder %s112, %s114
      %p121 = scmp.eq.s32.totalorder %s20, 1
      %p122 = por %p120, %p121
      %p123 = scmp.ne.s32.totalorder %s114, %s115
      %p124 = scmp.eq.s32.totalorder %s20, 0
      %p125 = por %p123, %p124
      %p126 = scmp.ne.s32.totalorder %s114, %s115
      %p127 = scmp.eq.s32.totalorder %s21, 1
      %p128 = por %p126, %p127
      %p130 = scmp.ne.s32.totalorder %s115, %s129
      %p131 = scmp.eq.s32.totalorder %s21, 0
      %p132 = por %p130, %p131
      %s133 = ssub.s32 %s15, %s22
      %p134 = scmp.eq.s32.totalorder %s133, 0
      %s136 = sadd.s32 %s135, 1
      %s137 = scalar_select %p134, %s135, %s136
      %p140 = pneg %p134
      %p141 = scmp.eq.s32.totalorder %s15, 1
      %p142 = por %p140, %p141
      %p143 = scmp.ne.s32.totalorder %s135, %s138
      %p144 = scmp.eq.s32.totalorder %s15, 0
      %p145 = por %p143, %p144
      %p146 = scmp.ne.s32.totalorder %s135, %s138
      %p147 = scmp.eq.s32.totalorder %s20, 1
      %p148 = por %p146, %p147
      %p149 = scmp.ne.s32.totalorder %s138, %s139
      %p150 = scmp.eq.s32.totalorder %s20, 0
      %p151 = por %p149, %p150
      %p152 = scmp.ne.s32.totalorder %s138, %s139
      %p153 = scmp.eq.s32.totalorder %s21, 1
      %p154 = por %p152, %p153
      %p156 = scmp.ne.s32.totalorder %s139, %s155
      %p157 = scmp.eq.s32.totalorder %s21, 0
      %p158 = por %p156, %p157
      %p159 = scmp.le.s32.totalorder 1, %s15
      %p160 = scmp.lt.s32.totalorder %s15, 3
      %p161 = pnand %p159, %p160
      %p162 = pneg %p161
      // Predicated region
      $region9: #{tpu_custom_call.1} parent=5 // pred_check
        _
      $region10: #{tpu_custom_call.1} parent=5 // pred_check_branch
        %164 = sbr.rel (%p161) target = $region12
      $region11: #{tpu_custom_call.1} parent=5 // pred_region
        %s165 = ssub.s32 %s15, 1
        // Predicated region
        $region13: #{tpu_custom_call.1} parent=11 // pred_check
          %p166 = pneg %p62
        $region14: #{tpu_custom_call.1} parent=11 // pred_check_branch
          %168 = sbr.rel (%p166) target = $region16
        $region15: #{tpu_custom_call.1} parent=11 // pred_region
          _
        $region16: #{tpu_custom_call.1} parent=11 // pred_fallthru
          _
        // Predicated region
        $region17: #{tpu_custom_call.1} parent=11 // pred_check
          %p169 = pneg %p83
        $region18: #{tpu_custom_call.1} parent=11 // pred_check_branch
          %171 = sbr.rel (%p169) target = $region20
        $region19: #{tpu_custom_call.1} parent=11 // pred_region
          _
        $region20: #{tpu_custom_call.1} parent=11 // pred_fallthru
          _
        // Predicated region
        $region21: #{tpu_custom_call.1} parent=11 // pred_check
          %p172 = pneg %p104
        $region22: #{tpu_custom_call.1} parent=11 // pred_check_branch
          %174 = sbr.rel (%p172) target = $region24
        $region23: #{tpu_custom_call.1} parent=11 // pred_region
          %176 = vsyncadd [#allocation3], 0
          %s177 = sshll.u32 %s3, 4
          %s178 = int_to_ptr.hbm [resolvable:$true] %s177
          %s179 = sshll.u32 [#allocation2], 4
          %s180 = int_to_ptr.vmem [resolvable:$true] %s179
          %185 = dma.hbm_to_vmem [thread:$0]  %s178, 1024, %s180, [#allocation3], 64, 64, 4
        $region24: #{tpu_custom_call.1} parent=11 // pred_fallthru
          _
        // Predicated region
        $region25: #{tpu_custom_call.1} parent=11 // pred_check
          %p186 = pneg %p125
        $region26: #{tpu_custom_call.1} parent=11 // pred_check_branch
          %188 = sbr.rel (%p186) target = $region28
        $region27: #{tpu_custom_call.1} parent=11 // pred_region
          _
        $region28: #{tpu_custom_call.1} parent=11 // pred_fallthru
          _
      $region12: #{tpu_custom_call.1} parent=5 // pred_fallthru
        _
      %p189 = scmp.lt.s32.totalorder %s15, 2
      // Predicated region
      $region29: #{tpu_custom_call.1} parent=5 // pred_check
        %p190 = pneg %p189
      $region30: #{tpu_custom_call.1} parent=5 // pred_check_branch
        %192 = sbr.rel (%p190) target = $region32
      $region31: #{tpu_custom_call.1} parent=5 // pred_region
        // Predicated region
        $region33: #{tpu_custom_call.1} parent=31 // pred_check
          %p193 = pneg %p35
        $region34: #{tpu_custom_call.1} parent=31 // pred_check_branch
          %195 = sbr.rel (%p193) target = $region36
        $region35: #{tpu_custom_call.1} parent=31 // pred_region
          %s196 = smul.u32 16, %s15
          %p197 = scmp.lt.s32.totalorder %s196, 31
          %s198 = scalar_select %p197, %s196, 31
          %s199 = smul.addr %s198, 8
          %s200 = scalar_lea.vmem %s0, %s199
          %s201 = smul.u32 16, %s15
        $region36: #{tpu_custom_call.1} parent=31 // pred_fallthru
          _
      $region32: #{tpu_custom_call.1} parent=5 // pred_fallthru
        _
      %p202 = scmp.le.s32.totalorder 1, %s15
      %p203 = scmp.lt.s32.totalorder %s15, 3
      %p204 = pnand %p202, %p203
      %p205 = pneg %p204
      // Predicated region
      $region37: #{tpu_custom_call.1} parent=5 // pred_check
        _
      $region38: #{tpu_custom_call.1} parent=5 // pred_check_branch
        %207 = sbr.rel (%p204) target = $region40
      $region39: #{tpu_custom_call.1} parent=5 // pred_region
        %s208 = ssub.s32 %s15, 1
        // Predicated region
        $region41: #{tpu_custom_call.1} parent=39 // pred_check
          %p209 = pneg %p104
        $region42: #{tpu_custom_call.1} parent=39 // pred_check_branch
          %211 = sbr.rel (%p209) target = $region44
        $region43: #{tpu_custom_call.1} parent=39 // pred_region
          %213 = dma.done [#allocation3], 1024
        $region44: #{tpu_custom_call.1} parent=39 // pred_fallthru
          _
        %s214 = smul.u32 16, %s20
        %p215 = scmp.lt.s32.totalorder %s214, 31
        %s216 = scalar_select %p215, %s214, 31
        %s217 = smul.addr %s216, 8
        %s218 = scalar_lea.vmem %s0, %s217
        %p219 = pneg %p41
        %p220 = pneg %p38
        %p221 = pneg %p62
        %p222 = pneg %p59
        %p223 = pneg %p83
        %p224 = pneg %p80
        %p225 = pneg %p104
        %p226 = pneg %p101
        %p227 = pneg %p125
        %p228 = pneg %p122
        %p229 = pneg %p151
        %p230 = pneg %p148
        %s231 = sand.u32 %s138, 1
        %s232 = scalar_lea.sflag [#allocation4], %s231
        %s233 = sand.u32 %s138, 1
        %s234 = smul.addr %s233, 8
        %s235 = scalar_lea.vmem [#allocation5], %s234
        %s236 = smul.u32 16, %s20
        %p237 = scmp.lt.s32.totalorder %s236, 31
        %s238 = scalar_select %p237, %s236, 31
        %s239 = smul.addr %s238, 8
        %s240 = scalar_lea.vmem %s0, %s239
        %s241 = smul.u32 16, %s20
        %v242 = vld [vmem:[%s240] sm:$0xff]
        %v243 = vld [vmem:[%s240 + $0x8] sm:$0xff]
        %v244 = vld [vmem:[%s240 + $0x10] sm:$0xff]
        %v245 = vld [vmem:[%s240 + $0x18] sm:$0xff]
        %v246 = vld [vmem:[%s240 + $0x20] sm:$0xff]
        %v247 = vld [vmem:[%s240 + $0x28] sm:$0xff]
        %v248 = vld [vmem:[%s240 + $0x30] sm:$0xff]
        %v249 = vld [vmem:[%s240 + $0x38] sm:$0xff]
        %v250 = vld [vmem:[%s240 + $0x40] sm:$0xff]
        %v251 = vld [vmem:[%s240 + $0x48] sm:$0xff]
        %v252 = vld [vmem:[%s240 + $0x50] sm:$0xff]
        %v253 = vld [vmem:[%s240 + $0x58] sm:$0xff]
        %v254 = vld [vmem:[%s240 + $0x60] sm:$0xff]
        %v255 = vld [vmem:[%s240 + $0x68] sm:$0xff]
        %v256 = vld [vmem:[%s240 + $0x70] sm:$0xff]
        %v257 = vld [vmem:[%s240 + $0x78] sm:$0xff]
        %v258 = vlaneseq
        %v259 = vand.u32 %v258, 127
        %260 = vset.pattern.permute.xlu0 0
        %261 = vperm.xlu0 %260, %v242
        %v262 = vpop.permute.xlu0 %261
        %263 = vset.pattern.permute.xlu0 0
        %264 = vperm.xlu0 %263, %v243
        %v265 = vpop.permute.xlu0 %264
        %266 = vset.pattern.permute.xlu0 0
        %267 = vperm.xlu0 %266, %v244
        %v268 = vpop.permute.xlu0 %267
        %269 = vset.pattern.permute.xlu0 0
        %270 = vperm.xlu0 %269, %v245
        %v271 = vpop.permute.xlu0 %270
        %272 = vset.pattern.permute.xlu0 0
        %273 = vperm.xlu0 %272, %v246
        %v274 = vpop.permute.xlu0 %273
        %275 = vset.pattern.permute.xlu0 0
        %276 = vperm.xlu0 %275, %v247
        %v277 = vpop.permute.xlu0 %276
        %278 = vset.pattern.permute.xlu0 0
        %279 = vperm.xlu0 %278, %v248
        %v280 = vpop.permute.xlu0 %279
        %281 = vset.pattern.permute.xlu0 0
        %282 = vperm.xlu0 %281, %v249
        %v283 = vpop.permute.xlu0 %282
        %284 = vset.pattern.permute.xlu0 0
        %285 = vperm.xlu0 %284, %v250
        %v286 = vpop.permute.xlu0 %285
        %287 = vset.pattern.permute.xlu0 0
        %288 = vperm.xlu0 %287, %v251
        %v289 = vpop.permute.xlu0 %288
        %290 = vset.pattern.permute.xlu0 0
        %291 = vperm.xlu0 %290, %v252
        %v292 = vpop.permute.xlu0 %291
        %293 = vset.pattern.permute.xlu0 0
        %294 = vperm.xlu0 %293, %v253
        %v295 = vpop.permute.xlu0 %294
        %296 = vset.pattern.permute.xlu0 0
        %297 = vperm.xlu0 %296, %v254
        %v298 = vpop.permute.xlu0 %297
        %299 = vset.pattern.permute.xlu0 0
        %300 = vperm.xlu0 %299, %v255
        %v301 = vpop.permute.xlu0 %300
        %302 = vset.pattern.permute.xlu0 0
        %303 = vperm.xlu0 %302, %v256
        %v304 = vpop.permute.xlu0 %303
        %305 = vset.pattern.permute.xlu0 0
        %306 = vperm.xlu0 %305, %v257
        %v307 = vpop.permute.xlu0 %306
        %vm308 = vcmp.eq.s32.totalorder %v262, %v259
        %vm309 = vcmp.eq.s32.totalorder %v265, %v259
        %vm310 = vcmp.eq.s32.totalorder %v268, %v259
        %vm311 = vcmp.eq.s32.totalorder %v271, %v259
        %vm312 = vcmp.eq.s32.totalorder %v274, %v259
        %vm313 = vcmp.eq.s32.totalorder %v277, %v259
        %vm314 = vcmp.eq.s32.totalorder %v280, %v259
        %vm315 = vcmp.eq.s32.totalorder %v283, %v259
        %vm316 = vcmp.eq.s32.totalorder %v286, %v259
        %vm317 = vcmp.eq.s32.totalorder %v289, %v259
        %vm318 = vcmp.eq.s32.totalorder %v292, %v259
        %vm319 = vcmp.eq.s32.totalorder %v295, %v259
        %vm320 = vcmp.eq.s32.totalorder %v298, %v259
        %vm321 = vcmp.eq.s32.totalorder %v301, %v259
        %vm322 = vcmp.eq.s32.totalorder %v304, %v259
        %vm323 = vcmp.eq.s32.totalorder %v307, %v259
        %v324 = vsel %vm308, 1.0, 0.0
        %v325 = vsel %vm309, 1.0, 0.0
        %v326 = vsel %vm310, 1.0, 0.0
        %v327 = vsel %vm311, 1.0, 0.0
        %v328 = vsel %vm312, 1.0, 0.0
        %v329 = vsel %vm313, 1.0, 0.0
        %v330 = vsel %vm314, 1.0, 0.0
        %v331 = vsel %vm315, 1.0, 0.0
        %v332 = vsel %vm316, 1.0, 0.0
        %v333 = vsel %vm317, 1.0, 0.0
        %v334 = vsel %vm318, 1.0, 0.0
        %v335 = vsel %vm319, 1.0, 0.0
        %v336 = vsel %vm320, 1.0, 0.0
        %v337 = vsel %vm321, 1.0, 0.0
        %v338 = vsel %vm322, 1.0, 0.0
        %v339 = vsel %vm323, 1.0, 0.0
        %v340 = vpack.c.bf16 %v325, %v324
        %v341 = vpack.c.bf16 %v327, %v326
        %v342 = vpack.c.bf16 %v329, %v328
        %v343 = vpack.c.bf16 %v331, %v330
        %v344 = vpack.c.bf16 %v333, %v332
        %v345 = vpack.c.bf16 %v335, %v334
        %v346 = vpack.c.bf16 %v337, %v336
        %v347 = vpack.c.bf16 %v339, %v338
        %v348 = vld [vmem:[%s1] sm:$0xf]
        %v349 = vld [vmem:[%s1 + $0x4] sm:$0xf]
        %v350 = vld [vmem:[%s1 + $0x8] sm:$0xf]
        %v351 = vld [vmem:[%s1 + $0xc] sm:$0xf]
        %v352 = vld [vmem:[%s1 + $0x10] sm:$0xf]
        %v353 = vld [vmem:[%s1 + $0x14] sm:$0xf]
        %v354 = vld [vmem:[%s1 + $0x18] sm:$0xf]
        %v355 = vld [vmem:[%s1 + $0x1c] sm:$0xf]
        %v356 = vld [vmem:[%s1 + $0x20] sm:$0xf]
        %v357 = vld [vmem:[%s1 + $0x24] sm:$0xf]
        %v358 = vld [vmem:[%s1 + $0x28] sm:$0xf]
        %v359 = vld [vmem:[%s1 + $0x2c] sm:$0xf]
        %v360 = vld [vmem:[%s1 + $0x30] sm:$0xf]
        %v361 = vld [vmem:[%s1 + $0x34] sm:$0xf]
        %v362 = vld [vmem:[%s1 + $0x38] sm:$0xf]
        %v363 = vld [vmem:[%s1 + $0x3c] sm:$0xf]
        %v380 = vunpack.c.l.b16 %v348
        %v381 = vunpack.c.l.b16 %v349
        %v382 = vunpack.c.l.b16 %v350
        %v383 = vunpack.c.l.b16 %v351
        %v384 = vunpack.c.l.b16 %v352
        %v385 = vunpack.c.l.b16 %v353
        %v386 = vunpack.c.l.b16 %v354
        %v387 = vunpack.c.l.b16 %v355
        %v388 = vunpack.c.l.b16 %v356
        %v389 = vunpack.c.l.b16 %v357
        %v390 = vunpack.c.l.b16 %v358
        %v391 = vunpack.c.l.b16 %v359
        %v392 = vunpack.c.l.b16 %v360
        %v393 = vunpack.c.l.b16 %v361
        %v394 = vunpack.c.l.b16 %v362
        %v395 = vunpack.c.l.b16 %v363
        %v396 = vpack.c.b16 %v381, %v380
        %v397 = vpack.c.b16 %v383, %v382
        %v398 = vpack.c.b16 %v385, %v384
        %v399 = vpack.c.b16 %v387, %v386
        %v400 = vpack.c.b16 %v389, %v388
        %v401 = vpack.c.b16 %v391, %v390
        %v402 = vpack.c.b16 %v393, %v392
        %v403 = vpack.c.b16 %v395, %v394
        %412 = vmatpush.bf16.msra.mxu0 %v403
        %413 = vmatpush.bf16.msra.mxu0 %v402
        %414 = vmatpush.bf16.msra.mxu0 %v401
        %415 = vmatpush.bf16.msra.mxu0 %v400
        %416 = vmatpush.bf16.msra.mxu0 %v399
        %417 = vmatpush.bf16.msra.mxu0 %v398
        %418 = vmatpush.bf16.msra.mxu0 %v397
        %419 = vmatpush.bf16.msra.mxu0 %v396
        %420 = vmatmul.bf16.gmra.mxu0 %v340
        %v421 = vpop.f32.mrf.mxu0
        %v422 = vadd.f32 0.0, %v421
        %v423 = vpop.f32.mrf.mxu0
        %v424 = vadd.f32 0.0, %v423
        %425 = vmatmul.bf16.gmra.mxu0 %v341
        %v426 = vpop.f32.mrf.mxu0
        %v427 = vadd.f32 0.0, %v426
        %v428 = vpop.f32.mrf.mxu0
        %v429 = vadd.f32 0.0, %v428
        %430 = vmatmul.bf16.gmra.mxu0 %v342
        %v431 = vpop.f32.mrf.mxu0
        %v432 = vadd.f32 0.0, %v431
        %v433 = vpop.f32.mrf.mxu0
        %v434 = vadd.f32 0.0, %v433
        %435 = vmatmul.bf16.gmra.mxu0 %v343
        %v436 = vpop.f32.mrf.mxu0
        %v437 = vadd.f32 0.0, %v436
        %v438 = vpop.f32.mrf.mxu0
        %v439 = vadd.f32 0.0, %v438
        %440 = vmatmul.bf16.gmra.mxu0 %v344
        %v441 = vpop.f32.mrf.mxu0
        %v442 = vadd.f32 0.0, %v441
        %v443 = vpop.f32.mrf.mxu0
        %v444 = vadd.f32 0.0, %v443
        %445 = vmatmul.bf16.gmra.mxu0 %v345
        %v446 = vpop.f32.mrf.mxu0
        %v447 = vadd.f32 0.0, %v446
        %v448 = vpop.f32.mrf.mxu0
        %v449 = vadd.f32 0.0, %v448
        %450 = vmatmul.bf16.gmra.mxu0 %v346
        %v451 = vpop.f32.mrf.mxu0
        %v452 = vadd.f32 0.0, %v451
        %v453 = vpop.f32.mrf.mxu0
        %v454 = vadd.f32 0.0, %v453
        %455 = vmatmul.bf16.gmra.mxu0 %v347
        %v456 = vpop.f32.mrf.mxu0
        %v457 = vadd.f32 0.0, %v456
        %v458 = vpop.f32.mrf.mxu0
        %v459 = vadd.f32 0.0, %v458
        %460 = vdwg.mxu0
        %v461 = vpack.c.bf16 %v424, %v422
        %v462 = vpack.c.bf16 %v429, %v427
        %v463 = vpack.c.bf16 %v434, %v432
        %v464 = vpack.c.bf16 %v439, %v437
        %v465 = vpack.c.bf16 %v444, %v442
        %v466 = vpack.c.bf16 %v449, %v447
        %v467 = vpack.c.bf16 %v454, %v452
        %v468 = vpack.c.bf16 %v459, %v457
        %v469 = vld [vmem:[%s2] sm:$0xf]
        %v470 = vld [vmem:[%s2 + $0x4] sm:$0xf]
        %v471 = vld [vmem:[%s2 + $0x8] sm:$0xf]
        %v472 = vld [vmem:[%s2 + $0xc] sm:$0xf]
        %v473 = vld [vmem:[%s2 + $0x10] sm:$0xf]
        %v474 = vld [vmem:[%s2 + $0x14] sm:$0xf]
        %v475 = vld [vmem:[%s2 + $0x18] sm:$0xf]
        %v476 = vld [vmem:[%s2 + $0x1c] sm:$0xf]
        %v477 = vld [vmem:[%s2 + $0x20] sm:$0xf]
        %v478 = vld [vmem:[%s2 + $0x24] sm:$0xf]
        %v479 = vld [vmem:[%s2 + $0x28] sm:$0xf]
        %v480 = vld [vmem:[%s2 + $0x2c] sm:$0xf]
        %v481 = vld [vmem:[%s2 + $0x30] sm:$0xf]
        %v482 = vld [vmem:[%s2 + $0x34] sm:$0xf]
        %v483 = vld [vmem:[%s2 + $0x38] sm:$0xf]
        %v484 = vld [vmem:[%s2 + $0x3c] sm:$0xf]
        %v485 = vrot.slane %v422, 1
        %v486 = vrot.slane %v424, 1
        %v487 = vrot.slane %v427, 1
        %v488 = vrot.slane %v429, 1
        %v489 = vrot.slane %v432, 1
        %v490 = vrot.slane %v434, 1
        %v491 = vrot.slane %v437, 1
        %v492 = vrot.slane %v439, 1
        %v493 = vrot.slane %v442, 1
        %v494 = vrot.slane %v444, 1
        %v495 = vrot.slane %v447, 1
        %v496 = vrot.slane %v449, 1
        %v497 = vrot.slane %v452, 1
        %v498 = vrot.slane %v454, 1
        %v499 = vrot.slane %v457, 1
        %v500 = vrot.slane %v459, 1
        %v501 = vlaneseq
        %v502 = vshrl.u32 %v501, 7
        %vm503 = vcmp.lt.s32.totalorder %v502, 7
        %v504 = vsel %vm503, %v499, %v500
        %v505 = vsel %vm503, %v498, %v499
        %v506 = vsel %vm503, %v497, %v498
        %v507 = vsel %vm503, %v496, %v497
        %v508 = vsel %vm503, %v495, %v496
        %v509 = vsel %vm503, %v494, %v495
        %v510 = vsel %vm503, %v493, %v494
        %v511 = vsel %vm503, %v492, %v493
        %v512 = vsel %vm503, %v491, %v492
        %v513 = vsel %vm503, %v490, %v491
        %v514 = vsel %vm503, %v489, %v490
        %v515 = vsel %vm503, %v488, %v489
        %v516 = vsel %vm503, %v487, %v488
        %v517 = vsel %vm503, %v486, %v487
        %v518 = vsel %vm503, %v485, %v486
        %v519 = vsel %vm503, %v500, %v485
        %v520 = vpack.c.bf16 %v517, %v518
        %v521 = vpack.c.bf16 %v515, %v516
        %v522 = vpack.c.bf16 %v513, %v514
        %v523 = vpack.c.bf16 %v511, %v512
        %v524 = vpack.c.bf16 %v509, %v510
        %v525 = vpack.c.bf16 %v507, %v508
        %v526 = vpack.c.bf16 %v505, %v506
        %v527 = vpack.c.bf16 %v519, %v504
        %s528 = scalar_lea.vmem %s2, 64
        %v529 = vld [vmem:[%s528] sm:$0xf]
        %v530 = vld [vmem:[%s528 + $0x4] sm:$0xf]
        %v531 = vld [vmem:[%s528 + $0x8] sm:$0xf]
        %v532 = vld [vmem:[%s528 + $0xc] sm:$0xf]
        %v533 = vld [vmem:[%s528 + $0x10] sm:$0xf]
        %v534 = vld [vmem:[%s528 + $0x14] sm:$0xf]
        %v535 = vld [vmem:[%s528 + $0x18] sm:$0xf]
        %v536 = vld [vmem:[%s528 + $0x1c] sm:$0xf]
        %v537 = vld [vmem:[%s528 + $0x20] sm:$0xf]
        %v538 = vld [vmem:[%s528 + $0x24] sm:$0xf]
        %v539 = vld [vmem:[%s528 + $0x28] sm:$0xf]
        %v540 = vld [vmem:[%s528 + $0x2c] sm:$0xf]
        %v541 = vld [vmem:[%s528 + $0x30] sm:$0xf]
        %v542 = vld [vmem:[%s528 + $0x34] sm:$0xf]
        %v543 = vld [vmem:[%s528 + $0x38] sm:$0xf]
        %v544 = vld [vmem:[%s528 + $0x3c] sm:$0xf]
        %v561 = vunpack.c.l.b16 %v529
        %v562 = vunpack.c.l.b16 %v530
        %v563 = vunpack.c.l.b16 %v531
        %v564 = vunpack.c.l.b16 %v532
        %v565 = vunpack.c.l.b16 %v533
        %v566 = vunpack.c.l.b16 %v534
        %v567 = vunpack.c.l.b16 %v535
        %v568 = vunpack.c.l.b16 %v536
        %v569 = vunpack.c.l.b16 %v537
        %v570 = vunpack.c.l.b16 %v538
        %v571 = vunpack.c.l.b16 %v539
        %v572 = vunpack.c.l.b16 %v540
        %v573 = vunpack.c.l.b16 %v541
        %v574 = vunpack.c.l.b16 %v542
        %v575 = vunpack.c.l.b16 %v543
        %v576 = vunpack.c.l.b16 %v544
        %v577 = vpack.c.b16 %v562, %v561
        %v578 = vpack.c.b16 %v564, %v563
        %v579 = vpack.c.b16 %v566, %v565
        %v580 = vpack.c.b16 %v568, %v567
        %v581 = vpack.c.b16 %v570, %v569
        %v582 = vpack.c.b16 %v572, %v571
        %v583 = vpack.c.b16 %v574, %v573
        %v584 = vpack.c.b16 %v576, %v575
        %593 = vmatpush.bf16.msra.mxu0 %v584
        %594 = vmatpush.bf16.msra.mxu0 %v583
        %595 = vmatpush.bf16.msra.mxu0 %v582
        %596 = vmatpush.bf16.msra.mxu0 %v581
        %597 = vmatpush.bf16.msra.mxu0 %v580
        %598 = vmatpush.bf16.msra.mxu0 %v579
        %599 = vmatpush.bf16.msra.mxu0 %v578
        %600 = vmatpush.bf16.msra.mxu0 %v577
        %601 = vmatmul.bf16.gmra.mxu0 %v520
        %v602 = vpop.f32.mrf.mxu0
        %v603 = vadd.f32 0.0, %v602
        %v604 = vpop.f32.mrf.mxu0
        %v605 = vadd.f32 0.0, %v604
        %606 = vmatmul.bf16.gmra.mxu0 %v521
        %v607 = vpop.f32.mrf.mxu0
        %v608 = vadd.f32 0.0, %v607
        %v609 = vpop.f32.mrf.mxu0
        %v610 = vadd.f32 0.0, %v609
        %611 = vmatmul.bf16.gmra.mxu0 %v522
        %v612 = vpop.f32.mrf.mxu0
        %v613 = vadd.f32 0.0, %v612
        %v614 = vpop.f32.mrf.mxu0
        %v615 = vadd.f32 0.0, %v614
        %616 = vmatmul.bf16.gmra.mxu0 %v523
        %v617 = vpop.f32.mrf.mxu0
        %v618 = vadd.f32 0.0, %v617
        %v619 = vpop.f32.mrf.mxu0
        %v620 = vadd.f32 0.0, %v619
        %621 = vmatmul.bf16.gmra.mxu0 %v524
        %v622 = vpop.f32.mrf.mxu0
        %v623 = vadd.f32 0.0, %v622
        %v624 = vpop.f32.mrf.mxu0
        %v625 = vadd.f32 0.0, %v624
        %626 = vmatmul.bf16.gmra.mxu0 %v525
        %v627 = vpop.f32.mrf.mxu0
        %v628 = vadd.f32 0.0, %v627
        %v629 = vpop.f32.mrf.mxu0
        %v630 = vadd.f32 0.0, %v629
        %631 = vmatmul.bf16.gmra.mxu0 %v526
        %v632 = vpop.f32.mrf.mxu0
        %v633 = vadd.f32 0.0, %v632
        %v634 = vpop.f32.mrf.mxu0
        %v635 = vadd.f32 0.0, %v634
        %636 = vmatmul.bf16.gmra.mxu0 %v527
        %v637 = vpop.f32.mrf.mxu0
        %v638 = vadd.f32 0.0, %v637
        %v639 = vpop.f32.mrf.mxu0
        %v640 = vadd.f32 0.0, %v639
        %641 = vdwg.mxu0
        %v658 = vunpack.c.l.b16 %v469
        %v659 = vunpack.c.l.b16 %v470
        %v660 = vunpack.c.l.b16 %v471
        %v661 = vunpack.c.l.b16 %v472
        %v662 = vunpack.c.l.b16 %v473
        %v663 = vunpack.c.l.b16 %v474
        %v664 = vunpack.c.l.b16 %v475
        %v665 = vunpack.c.l.b16 %v476
        %v666 = vunpack.c.l.b16 %v477
        %v667 = vunpack.c.l.b16 %v478
        %v668 = vunpack.c.l.b16 %v479
        %v669 = vunpack.c.l.b16 %v480
        %v670 = vunpack.c.l.b16 %v481
        %v671 = vunpack.c.l.b16 %v482
        %v672 = vunpack.c.l.b16 %v483
        %v673 = vunpack.c.l.b16 %v484
        %v674 = vpack.c.b16 %v659, %v658
        %v675 = vpack.c.b16 %v661, %v660
        %v676 = vpack.c.b16 %v663, %v662
        %v677 = vpack.c.b16 %v665, %v664
        %v678 = vpack.c.b16 %v667, %v666
        %v679 = vpack.c.b16 %v669, %v668
        %v680 = vpack.c.b16 %v671, %v670
        %v681 = vpack.c.b16 %v673, %v672
        %690 = vmatpush.bf16.msra.mxu0 %v681
        %691 = vmatpush.bf16.msra.mxu0 %v680
        %692 = vmatpush.bf16.msra.mxu0 %v679
        %693 = vmatpush.bf16.msra.mxu0 %v678
        %694 = vmatpush.bf16.msra.mxu0 %v677
        %695 = vmatpush.bf16.msra.mxu0 %v676
        %696 = vmatpush.bf16.msra.mxu0 %v675
        %697 = vmatpush.bf16.msra.mxu0 %v674
        %698 = vmatmul.bf16.gmra.mxu0 %v461
        %v699 = vpop.f32.mrf.mxu0
        %v700 = vadd.f32 %v603, %v699
        %v701 = vpop.f32.mrf.mxu0
        %v702 = vadd.f32 %v605, %v701
        %703 = vmatmul.bf16.gmra.mxu0 %v462
        %v704 = vpop.f32.mrf.mxu0
        %v705 = vadd.f32 %v608, %v704
        %v706 = vpop.f32.mrf.mxu0
        %v707 = vadd.f32 %v610, %v706
        %708 = vmatmul.bf16.gmra.mxu0 %v463
        %v709 = vpop.f32.mrf.mxu0
        %v710 = vadd.f32 %v613, %v709
        %v711 = vpop.f32.mrf.mxu0
        %v712 = vadd.f32 %v615, %v711
        %713 = vmatmul.bf16.gmra.mxu0 %v464
        %v714 = vpop.f32.mrf.mxu0
        %v715 = vadd.f32 %v618, %v714
        %v716 = vpop.f32.mrf.mxu0
        %v717 = vadd.f32 %v620, %v716
        %718 = vmatmul.bf16.gmra.mxu0 %v465
        %v719 = vpop.f32.mrf.mxu0
        %v720 = vadd.f32 %v623, %v719
        %v721 = vpop.f32.mrf.mxu0
        %v722 = vadd.f32 %v625, %v721
        %723 = vmatmul.bf16.gmra.mxu0 %v466
        %v724 = vpop.f32.mrf.mxu0
        %v725 = vadd.f32 %v628, %v724
        %v726 = vpop.f32.mrf.mxu0
        %v727 = vadd.f32 %v630, %v726
        %728 = vmatmul.bf16.gmra.mxu0 %v467
        %v729 = vpop.f32.mrf.mxu0
        %v730 = vadd.f32 %v633, %v729
        %v731 = vpop.f32.mrf.mxu0
        %v732 = vadd.f32 %v635, %v731
        %733 = vmatmul.bf16.gmra.mxu0 %v468
        %v734 = vpop.f32.mrf.mxu0
        %v735 = vadd.f32 %v638, %v734
        %v736 = vpop.f32.mrf.mxu0
        %v737 = vadd.f32 %v640, %v736
        %738 = vdwg.mxu0
        %v739 = vrot.slane %v422, 2
        %v740 = vrot.slane %v424, 2
        %v741 = vrot.slane %v427, 2
        %v742 = vrot.slane %v429, 2
        %v743 = vrot.slane %v432, 2
        %v744 = vrot.slane %v434, 2
        %v745 = vrot.slane %v437, 2
        %v746 = vrot.slane %v439, 2
        %v747 = vrot.slane %v442, 2
        %v748 = vrot.slane %v444, 2
        %v749 = vrot.slane %v447, 2
        %v750 = vrot.slane %v449, 2
        %v751 = vrot.slane %v452, 2
        %v752 = vrot.slane %v454, 2
        %v753 = vrot.slane %v457, 2
        %v754 = vrot.slane %v459, 2
        %vm755 = vcmp.lt.s32.totalorder %v502, 6
        %v756 = vsel %vm755, %v753, %v754
        %v757 = vsel %vm755, %v752, %v753
        %v758 = vsel %vm755, %v751, %v752
        %v759 = vsel %vm755, %v750, %v751
        %v760 = vsel %vm755, %v749, %v750
        %v761 = vsel %vm755, %v748, %v749
        %v762 = vsel %vm755, %v747, %v748
        %v763 = vsel %vm755, %v746, %v747
        %v764 = vsel %vm755, %v745, %v746
        %v765 = vsel %vm755, %v744, %v745
        %v766 = vsel %vm755, %v743, %v744
        %v767 = vsel %vm755, %v742, %v743
        %v768 = vsel %vm755, %v741, %v742
        %v769 = vsel %vm755, %v740, %v741
        %v770 = vsel %vm755, %v739, %v740
        %v771 = vsel %vm755, %v754, %v739
        %v772 = vpack.c.bf16 %v769, %v770
        %v773 = vpack.c.bf16 %v767, %v768
        %v774 = vpack.c.bf16 %v765, %v766
        %v775 = vpack.c.bf16 %v763, %v764
        %v776 = vpack.c.bf16 %v761, %v762
        %v777 = vpack.c.bf16 %v759, %v760
        %v778 = vpack.c.bf16 %v757, %v758
        %v779 = vpack.c.bf16 %v771, %v756
        %s780 = scalar_lea.vmem %s2, 128
        %v781 = vld [vmem:[%s780] sm:$0xf]
        %v782 = vld [vmem:[%s780 + $0x4] sm:$0xf]
        %v783 = vld [vmem:[%s780 + $0x8] sm:$0xf]
        %v784 = vld [vmem:[%s780 + $0xc] sm:$0xf]
        %v785 = vld [vmem:[%s780 + $0x10] sm:$0xf]
        %v786 = vld [vmem:[%s780 + $0x14] sm:$0xf]
        %v787 = vld [vmem:[%s780 + $0x18] sm:$0xf]
        %v788 = vld [vmem:[%s780 + $0x1c] sm:$0xf]
        %v789 = vld [vmem:[%s780 + $0x20] sm:$0xf]
        %v790 = vld [vmem:[%s780 + $0x24] sm:$0xf]
        %v791 = vld [vmem:[%s780 + $0x28] sm:$0xf]
        %v792 = vld [vmem:[%s780 + $0x2c] sm:$0xf]
        %v793 = vld [vmem:[%s780 + $0x30] sm:$0xf]
        %v794 = vld [vmem:[%s780 + $0x34] sm:$0xf]
        %v795 = vld [vmem:[%s780 + $0x38] sm:$0xf]
        %v796 = vld [vmem:[%s780 + $0x3c] sm:$0xf]
        %v813 = vunpack.c.l.b16 %v781
        %v814 = vunpack.c.l.b16 %v782
        %v815 = vunpack.c.l.b16 %v783
        %v816 = vunpack.c.l.b16 %v784
        %v817 = vunpack.c.l.b16 %v785
        %v818 = vunpack.c.l.b16 %v786
        %v819 = vunpack.c.l.b16 %v787
        %v820 = vunpack.c.l.b16 %v788
        %v821 = vunpack.c.l.b16 %v789
        %v822 = vunpack.c.l.b16 %v790
        %v823 = vunpack.c.l.b16 %v791
        %v824 = vunpack.c.l.b16 %v792
        %v825 = vunpack.c.l.b16 %v793
        %v826 = vunpack.c.l.b16 %v794
        %v827 = vunpack.c.l.b16 %v795
        %v828 = vunpack.c.l.b16 %v796
        %v829 = vpack.c.b16 %v814, %v813
        %v830 = vpack.c.b16 %v816, %v815
        %v831 = vpack.c.b16 %v818, %v817
        %v832 = vpack.c.b16 %v820, %v819
        %v833 = vpack.c.b16 %v822, %v821
        %v834 = vpack.c.b16 %v824, %v823
        %v835 = vpack.c.b16 %v826, %v825
        %v836 = vpack.c.b16 %v828, %v827
        %845 = vmatpush.bf16.msra.mxu0 %v836
        %846 = vmatpush.bf16.msra.mxu0 %v835
        %847 = vmatpush.bf16.msra.mxu0 %v834
        %848 = vmatpush.bf16.msra.mxu0 %v833
        %849 = vmatpush.bf16.msra.mxu0 %v832
        %850 = vmatpush.bf16.msra.mxu0 %v831
        %851 = vmatpush.bf16.msra.mxu0 %v830
        %852 = vmatpush.bf16.msra.mxu0 %v829
        %853 = vmatmul.bf16.gmra.mxu0 %v772
        %v854 = vpop.f32.mrf.mxu0
        %v855 = vadd.f32 0.0, %v854
        %v856 = vpop.f32.mrf.mxu0
        %v857 = vadd.f32 0.0, %v856
        %858 = vmatmul.bf16.gmra.mxu0 %v773
        %v859 = vpop.f32.mrf.mxu0
        %v860 = vadd.f32 0.0, %v859
        %v861 = vpop.f32.mrf.mxu0
        %v862 = vadd.f32 0.0, %v861
        %863 = vmatmul.bf16.gmra.mxu0 %v774
        %v864 = vpop.f32.mrf.mxu0
        %v865 = vadd.f32 0.0, %v864
        %v866 = vpop.f32.mrf.mxu0
        %v867 = vadd.f32 0.0, %v866
        %868 = vmatmul.bf16.gmra.mxu0 %v775
        %v869 = vpop.f32.mrf.mxu0
        %v870 = vadd.f32 0.0, %v869
        %v871 = vpop.f32.mrf.mxu0
        %v872 = vadd.f32 0.0, %v871
        %873 = vmatmul.bf16.gmra.mxu0 %v776
        %v874 = vpop.f32.mrf.mxu0
        %v875 = vadd.f32 0.0, %v874
        %v876 = vpop.f32.mrf.mxu0
        %v877 = vadd.f32 0.0, %v876
        %878 = vmatmul.bf16.gmra.mxu0 %v777
        %v879 = vpop.f32.mrf.mxu0
        %v880 = vadd.f32 0.0, %v879
        %v881 = vpop.f32.mrf.mxu0
        %v882 = vadd.f32 0.0, %v881
        %883 = vmatmul.bf16.gmra.mxu0 %v778
        %v884 = vpop.f32.mrf.mxu0
        %v885 = vadd.f32 0.0, %v884
        %v886 = vpop.f32.mrf.mxu0
        %v887 = vadd.f32 0.0, %v886
        %888 = vmatmul.bf16.gmra.mxu0 %v779
        %v889 = vpop.f32.mrf.mxu0
        %v890 = vadd.f32 0.0, %v889
        %v891 = vpop.f32.mrf.mxu0
        %v892 = vadd.f32 0.0, %v891
        %893 = vdwg.mxu0
        %v894 = vadd.f32 %v700, %v855
        %v895 = vadd.f32 %v702, %v857
        %v896 = vadd.f32 %v705, %v860
        %v897 = vadd.f32 %v707, %v862
        %v898 = vadd.f32 %v710, %v865
        %v899 = vadd.f32 %v712, %v867
        %v900 = vadd.f32 %v715, %v870
        %v901 = vadd.f32 %v717, %v872
        %v902 = vadd.f32 %v720, %v875
        %v903 = vadd.f32 %v722, %v877
        %v904 = vadd.f32 %v725, %v880
        %v905 = vadd.f32 %v727, %v882
        %v906 = vadd.f32 %v730, %v885
        %v907 = vadd.f32 %v732, %v887
        %v908 = vadd.f32 %v735, %v890
        %v909 = vadd.f32 %v737, %v892
        %v910 = vadd.s32 %v502, 8
        %vm911 = vcmp.ge.s32.totalorder %v259, 25
        %vm912 = vcmp.lt.s32.totalorder %v259, 50
        %vm913 = vmand %vm911, %vm912
        %v914 = vsel %vm913, 15, 16
        %vm915 = vcmp.ge.s32.totalorder %v259, 50
        %vm916 = vcmp.lt.s32.totalorder %v259, 75
        %vm917 = vmand %vm915, %vm916
        %v918 = vsel %vm917, 14, %v914
        %vm919 = vcmp.lt.s32.totalorder %v502, %v918
        %vm920 = vcmp.lt.s32.totalorder %v910, %v918
        %v921 = vsel %vm919, %v894, -1e+30
        %v922 = vsel %vm920, %v895, -1e+30
        %v923 = vsel %vm919, %v896, -1e+30
        %v924 = vsel %vm920, %v897, -1e+30
        %v925 = vsel %vm919, %v898, -1e+30
        %v926 = vsel %vm920, %v899, -1e+30
        %v927 = vsel %vm919, %v900, -1e+30
        %v928 = vsel %vm920, %v901, -1e+30
        %v929 = vsel %vm919, %v902, -1e+30
        %v930 = vsel %vm920, %v903, -1e+30
        %v931 = vsel %vm919, %v904, -1e+30
        %v932 = vsel %vm920, %v905, -1e+30
        %v933 = vsel %vm919, %v906, -1e+30
        %v934 = vsel %vm920, %v907, -1e+30
        %v935 = vsel %vm919, %v908, -1e+30
        %v936 = vsel %vm920, %v909, -1e+30
        %v937 = vmax.f32 %v921, %v922
        %v938 = vrot.slane %v937, 4
        %v939 = vmax.f32 %v937, %v938
        %v940 = vrot.slane %v939, 2
        %v941 = vmax.f32 %v939, %v940
        %v942 = vrot.slane %v941, 1
        %v943 = vmax.f32 %v941, %v942
        %v944 = vmax.f32 %v923, %v924
        %v945 = vrot.slane %v944, 4
        %v946 = vmax.f32 %v944, %v945
        %v947 = vrot.slane %v946, 2
        %v948 = vmax.f32 %v946, %v947
        %v949 = vrot.slane %v948, 1
        %v950 = vmax.f32 %v948, %v949
        %v951 = vmax.f32 %v925, %v926
        %v952 = vrot.slane %v951, 4
        %v953 = vmax.f32 %v951, %v952
        %v954 = vrot.slane %v953, 2
        %v955 = vmax.f32 %v953, %v954
        %v956 = vrot.slane %v955, 1
        %v957 = vmax.f32 %v955, %v956
        %v958 = vmax.f32 %v927, %v928
        %v959 = vrot.slane %v958, 4
        %v960 = vmax.f32 %v958, %v959
        %v961 = vrot.slane %v960, 2
        %v962 = vmax.f32 %v960, %v961
        %v963 = vrot.slane %v962, 1
        %v964 = vmax.f32 %v962, %v963
        %v965 = vmax.f32 %v929, %v930
        %v966 = vrot.slane %v965, 4
        %v967 = vmax.f32 %v965, %v966
        %v968 = vrot.slane %v967, 2
        %v969 = vmax.f32 %v967, %v968
        %v970 = vrot.slane %v969, 1
        %v971 = vmax.f32 %v969, %v970
        %v972 = vmax.f32 %v931, %v932
        %v973 = vrot.slane %v972, 4
        %v974 = vmax.f32 %v972, %v973
        %v975 = vrot.slane %v974, 2
        %v976 = vmax.f32 %v974, %v975
        %v977 = vrot.slane %v976, 1
        %v978 = vmax.f32 %v976, %v977
        %v979 = vmax.f32 %v933, %v934
        %v980 = vrot.slane %v979, 4
        %v981 = vmax.f32 %v979, %v980
        %v982 = vrot.slane %v981, 2
        %v983 = vmax.f32 %v981, %v982
        %v984 = vrot.slane %v983, 1
        %v985 = vmax.f32 %v983, %v984
        %v986 = vmax.f32 %v935, %v936
        %v987 = vrot.slane %v986, 4
        %v988 = vmax.f32 %v986, %v987
        %v989 = vrot.slane %v988, 2
        %v990 = vmax.f32 %v988, %v989
        %v991 = vrot.slane %v990, 1
        %v992 = vmax.f32 %v990, %v991
        %v993 = vpack.c.bf16 %v943, %v943
        %v994 = vpack.c.bf16 %v950, %v950
        %v995 = vpack.c.bf16 %v957, %v957
        %v996 = vpack.c.bf16 %v964, %v964
        %v997 = vpack.c.bf16 %v971, %v971
        %v998 = vpack.c.bf16 %v978, %v978
        %v999 = vpack.c.bf16 %v985, %v985
        %v1000 = vpack.c.bf16 %v992, %v992
        %v1001 = vld [vmem:[#allocation2] sm:$0xf]
        %v1002 = vld [vmem:[#allocation2 + $0x4] sm:$0xf]
        %v1003 = vld [vmem:[#allocation2 + $0x8] sm:$0xf]
        %v1004 = vld [vmem:[#allocation2 + $0xc] sm:$0xf]
        %v1005 = vld [vmem:[#allocation2 + $0x10] sm:$0xf]
        %v1006 = vld [vmem:[#allocation2 + $0x14] sm:$0xf]
        %v1007 = vld [vmem:[#allocation2 + $0x18] sm:$0xf]
        %v1008 = vld [vmem:[#allocation2 + $0x1c] sm:$0xf]
        %v1009 = vld [vmem:[#allocation2 + $0x20] sm:$0xf]
        %v1010 = vld [vmem:[#allocation2 + $0x24] sm:$0xf]
        %v1011 = vld [vmem:[#allocation2 + $0x28] sm:$0xf]
        %v1012 = vld [vmem:[#allocation2 + $0x2c] sm:$0xf]
        %v1013 = vld [vmem:[#allocation2 + $0x30] sm:$0xf]
        %v1014 = vld [vmem:[#allocation2 + $0x34] sm:$0xf]
        %v1015 = vld [vmem:[#allocation2 + $0x38] sm:$0xf]
        %v1016 = vld [vmem:[#allocation2 + $0x3c] sm:$0xf]
        %v1017 = vld [vmem:[%s4] sm:$0x1]
        %v1019 = vperm.slane %v1017, 0
        %v1029 = vunpack.c.l.b16 %v993
        %v1030 = vunpack.c.l.b16 %v994
        %v1031 = vunpack.c.l.b16 %v995
        %v1032 = vunpack.c.l.b16 %v996
        %v1033 = vunpack.c.l.b16 %v997
        %v1034 = vunpack.c.l.b16 %v998
        %v1035 = vunpack.c.l.b16 %v999
        %v1036 = vunpack.c.l.b16 %v1000
        %vm1037 = vcmask 1041409
        %v1038 = vsel %vm1037, %v1030, %v1029
        %vm1039 = vcmask 1042434
        %v1040 = vsel %vm1039, %v1031, %v1038
        %vm1041 = vcmask 1043459
        %v1042 = vsel %vm1041, %v1032, %v1040
        %vm1043 = vcmask 1044484
        %v1044 = vsel %vm1043, %v1033, %v1042
        %vm1045 = vcmask 1045509
        %v1046 = vsel %vm1045, %v1034, %v1044
        %vm1047 = vcmask 1046534
        %v1048 = vsel %vm1047, %v1035, %v1046
        %vm1049 = vcmask 1047559
        %v1050 = vsel %vm1049, %v1036, %v1048
        %v1051 = vpack.c.b16 %v1050, %v1050
        %v1069 = vunpack.c.l.b16 %v1001
        %v1070 = vunpack.c.l.b16 %v1002
        %v1071 = vunpack.c.l.b16 %v1003
        %v1072 = vunpack.c.l.b16 %v1004
        %v1073 = vunpack.c.l.b16 %v1005
        %v1074 = vunpack.c.l.b16 %v1006
        %v1075 = vunpack.c.l.b16 %v1007
        %v1076 = vunpack.c.l.b16 %v1008
        %v1077 = vunpack.c.l.b16 %v1009
        %v1078 = vunpack.c.l.b16 %v1010
        %v1079 = vunpack.c.l.b16 %v1011
        %v1080 = vunpack.c.l.b16 %v1012
        %v1081 = vunpack.c.l.b16 %v1013
        %v1082 = vunpack.c.l.b16 %v1014
        %v1083 = vunpack.c.l.b16 %v1015
        %v1084 = vunpack.c.l.b16 %v1016
        %v1085 = vpack.c.b16 %v1070, %v1069
        %v1086 = vpack.c.b16 %v1072, %v1071
        %v1087 = vpack.c.b16 %v1074, %v1073
        %v1088 = vpack.c.b16 %v1076, %v1075
        %v1089 = vpack.c.b16 %v1078, %v1077
        %v1090 = vpack.c.b16 %v1080, %v1079
        %v1091 = vpack.c.b16 %v1082, %v1081
        %v1092 = vpack.c.b16 %v1084, %v1083
        %1101 = vmatpush.bf16.msra.mxu0 %v1092
        %1102 = vmatpush.bf16.msra.mxu0 %v1091
        %1103 = vmatpush.bf16.msra.mxu0 %v1090
        %1104 = vmatpush.bf16.msra.mxu0 %v1089
        %1105 = vmatpush.bf16.msra.mxu0 %v1088
        %1106 = vmatpush.bf16.msra.mxu0 %v1087
        %1107 = vmatpush.bf16.msra.mxu0 %v1086
        %1108 = vmatpush.bf16.msra.mxu0 %v1085
        %1109 = vmatmul.bf16.gmra.mxu0 %v1051
        %v1110 = vpop.f32.mrf.mxu0
        %v1111 = vadd.f32 %v1019, %v1110
        %v1112 = vpop.f32.mrf.mxu0
        %1113 = vdwg.mxu0
        %1114 = vst [vmem:[%s235] sm:$0xff] %v1111
        %s1115 = sand.u32 %s138, 1
        %s1116 = scalar_lea.sflag [#allocation4], %s1115
        %s1117 = sand.u32 %s138, 1
        %s1118 = smul.addr %s1117, 8
        %s1119 = scalar_lea.vmem [#allocation5], %s1118
        // Predicated region
        $region45: #{tpu_custom_call.1} parent=39 // pred_check
          %p1120 = pneg %p148
        $region46: #{tpu_custom_call.1} parent=39 // pred_check_branch
          %1122 = sbr.rel (%p1120) target = $region48
        $region47: #{tpu_custom_call.1} parent=39 // pred_region
          %1124 = vsyncadd %s1116, 0
          %s1125 = smul.addr %s20, 8
          %s1126 = scalar_lea.hbm %s5, %s1125
          %s1128 = sshll.u32 %s1119, 4
          %s1129 = int_to_ptr.vmem [resolvable:$true] %s1128
          %s1130 = sshll.u32 %s1126, 4
          %s1131 = int_to_ptr.hbm [resolvable:$true] %s1130
          %1133 = dma.vmem_to_hbm [thread:$0]  %s1129, 128, %s1131, %s1116
        $region48: #{tpu_custom_call.1} parent=39 // pred_fallthru
          _
      $region40: #{tpu_custom_call.1} parent=5 // pred_fallthru
        _
      %p1134 = scmp.le.s32.totalorder 2, %s15
      // Predicated region
      $region49: #{tpu_custom_call.1} parent=5 // pred_check
        %p1135 = pneg %p1134
      $region50: #{tpu_custom_call.1} parent=5 // pred_check_branch
        %1137 = sbr.rel (%p1135) target = $region52
      $region51: #{tpu_custom_call.1} parent=5 // pred_region
        %s1138 = ssub.s32 %s15, 2
        // Predicated region
        $region53: #{tpu_custom_call.1} parent=51 // pred_check
          %p1139 = pneg %p154
        $region54: #{tpu_custom_call.1} parent=51 // pred_check_branch
          %1141 = sbr.rel (%p1139) target = $region56
        $region55: #{tpu_custom_call.1} parent=51 // pred_region
          %s1142 = sand.u32 %s139, 1
          %s1143 = scalar_lea.sflag [#allocation4], %s1142
          %s1144 = sand.u32 %s139, 1
          %s1145 = smul.addr %s1144, 8
          %s1146 = scalar_lea.vmem [#allocation5], %s1145
          %1148 = dma.done %s1143, 128
        $region56: #{tpu_custom_call.1} parent=51 // pred_fallthru
          _
      $region52: #{tpu_custom_call.1} parent=5 // pred_fallthru
        _
    $region6: #{tpu_custom_call.1} parent=1 // loop_footer
      %s19 = sadd.s32 1, %s15
    $region7: #{tpu_custom_call.1} parent=1 // loop_footer_branch
      %14 = sbr.rel target = $region3
    $region8: #{tpu_custom_call.1} parent=1 // loop_exit
      _
    %1149 = vsyncpa [#allocation3], 1
    %s1150 = scalar_lea.sflag [#allocation3], 1
    %1151 = vsyncpa %s1150, 1
    %1152 = vsyncpa [#allocation4], 1
    %s1153 = scalar_lea.sflag [#allocation4], 1
    %1154 = vsyncpa %s1153, 1

</llo_original>
